<compile_context>
chip_gen: v5e
topology: v5e:2x2
jax: 0.10.0
libtpu: 0.0.40
codegen_flags: <defaults>
</compile_context>

<pallas_src>
import functools

import jax
import jax.numpy as jnp
from jax import lax
from jax.experimental import pallas as pl
from jax.experimental.pallas import tpu as pltpu

_LANES = 128
_MIN_TILE_ELEMS = 8 * _LANES   # one (8, 128) f32 vreg tile
_TILE_ROWS = 1024              # (1024, 128) f32 = 512 KiB per pipelined buffer


def _mask_kernel(threshold_i32, x_ref, bits_ref, o_ref):
    """out = x * (bits < threshold).

    `bits` are uniform int32 (bitcast of uniform uint32), so a signed compare
    against `threshold = round(keep_prob * 2^32) - 2^31` keeps each element
    with probability keep_prob. Integer compare only — keeps the VPU out of
    the way on this purely HBM-bound kernel.
    """
    keep = (bits_ref[...] < jnp.int32(threshold_i32)).astype(x_ref.dtype)
    o_ref[...] = x_ref[...] * keep


def prototype_mask(x, p=0.5, training=True, key=None, return_mask=False):
    """JAX/Pallas equivalent of PrototypeMask.forward.

    Training: returns (X * mask, mask) with mask ~ Bernoulli(1 - p); `mask`
    (mirroring `self.mask`) is only materialized when `return_mask=True`, so
    the kernel writes a single output. Eval: returns (X * (1 - p), None) via
    plain XLA (no kernel needed for a scalar multiply).

    NOTE: supply a fresh `key` every training step — the mask is a
    deterministic function of `key`.
    """
    if not training:
        return x * jnp.asarray(1.0 - p, dtype=x.dtype), None

    if key is None:
        key = jax.random.PRNGKey(0)

    keep_prob = 1.0 - float(p)
    # Signed threshold matching the bitcast-to-int32 uniform bits.
    threshold = int(round(keep_prob * 4294967296.0)) - 2147483648
    threshold = max(-(2 ** 31), min(2 ** 31 - 1, threshold))

    n = x.size
    pad = (-n) % _MIN_TILE_ELEMS
    flat = x.reshape(-1)
    if pad:  # only copy when the size is not already (8*128)-aligned
        flat = jnp.pad(flat, (0, pad))
    rows = flat.shape[0] // _LANES
    x_slab = flat.reshape(rows, _LANES)

    # Uniform random bits, generated once by XLA and streamed through the kernel.
    bits = jax.random.bits(key, (rows, _LANES), dtype=jnp.uint32)
    bits = lax.bitcast_convert_type(bits, jnp.int32)

    tile_rows = min(_TILE_ROWS, rows)
    grid = (pl.cdiv(rows, tile_rows),)

    out_slab = pl.pallas_call(
        functools.partial(_mask_kernel, threshold),
        out_shape=jax.ShapeDtypeStruct((rows, _LANES), x.dtype),
        grid=grid,
        in_specs=[
            pl.BlockSpec((tile_rows, _LANES), lambda i: (i, 0)),
            pl.BlockSpec((tile_rows, _LANES), lambda i: (i, 0)),
        ],
        out_specs=pl.BlockSpec((tile_rows, _LANES), lambda i: (i, 0)),
        compiler_params=pltpu.CompilerParams(
            # Row tiles are independent -> shard across v7x's 2 TensorCores
            # (free/no-op on single-core v5e/v6e).
            dimension_semantics=("parallel",),
        ),
    )(x_slab, bits)

    out_flat = out_slab.reshape(-1)
    if pad:
        out_flat = out_flat[:n]
    out = out_flat.reshape(x.shape)

    mask = None
    if return_mask:
        # Recompute the mask (cheap XLA elementwise) only when requested, so the
        # kernel itself never writes the mask to HBM.
        mask_flat = (bits < jnp.int32(threshold)).astype(x.dtype).reshape(-1)
        if pad:
            mask_flat = mask_flat[:n]
        mask = mask_flat.reshape(x.shape)
    return out, mask


if __name__ == "__main__":
    root = jax.random.PRNGKey(0)
    kx, kmask = jax.random.split(root)

    # Small NCHW-like activations (the kernel flattens to a lane-dense slab,
    # so the exact rank does not matter).
    x = jax.random.normal(kx, (2, 4, 16, 16), dtype=jnp.float32)
    p = 0.5

    # Training path: Bernoulli(1 - p) mask, out = x * mask.
    out_train, mask = prototype_mask(x, p=p, training=True, key=kmask,
                                     return_mask=True)
    out_train = jax.block_until_ready(out_train)
    mask = jax.block_until_ready(mask)

    assert bool(jnp.all((mask == 0.0) | (mask == 1.0)))
    assert bool(jnp.allclose(out_train, x * mask))
    keep_rate = float(jnp.mean(mask))
    assert 0.3 < keep_rate < 0.7, keep_rate

    # Eval path: out = x * (1 - p) (plain XLA).
    out_eval, _ = prototype_mask(x, p=p, training=False)
    out_eval = jax.block_until_ready(out_eval)
    assert bool(jnp.allclose(out_eval, x * (1.0 - p), rtol=1e-6, atol=1e-6))

    print("KERNEL_OK")
</pallas_src>

<mosaic_0001>
module attributes {stable_mosaic.version = 11 : i64} {
  func.func @_mask_kernel(%arg0: i32, %arg1: memref<16x128xf32, #tpu.memory_space<vmem>>, %arg2: memref<16x128xi32, #tpu.memory_space<vmem>>, %arg3: memref<16x128xf32, #tpu.memory_space<vmem>>) attributes {dimension_semantics = [#tpu.dimension_semantics<parallel>], iteration_bounds = array<i64: 1>, scalar_prefetch = 0 : i64, scratch_operands = 0 : i64, tpu.core_type = #tpu.core_type<tc>, window_params = [{transform_indices = @transform_0, window_bounds = array<i64: 16, 128>}, {transform_indices = @transform_1, window_bounds = array<i64: 16, 128>}, {transform_indices = @transform_2, window_bounds = array<i64: 16, 128>}]} {
    %c0 = arith.constant 0 : index
    %c0_0 = arith.constant 0 : index
    %0 = vector.load %arg2[%c0, %c0_0] : memref<16x128xi32, #tpu.memory_space<vmem>>, vector<16x128xi32>
    %c0_i32 = arith.constant 0 : i32
    %1 = vector.broadcast %c0_i32 : i32 to vector<16x128xi32>
    %2 = arith.cmpi slt, %0, %1 : vector<16x128xi32>
    %3 = arith.extui %2 : vector<16x128xi1> to vector<16x128xi32>
    %4 = arith.sitofp %3 : vector<16x128xi32> to vector<16x128xf32>
    %c0_1 = arith.constant 0 : index
    %c0_2 = arith.constant 0 : index
    %5 = vector.load %arg1[%c0_1, %c0_2] : memref<16x128xf32, #tpu.memory_space<vmem>>, vector<16x128xf32>
    %6 = arith.mulf %5, %4 : vector<16x128xf32>
    %c0_3 = arith.constant 0 : index
    %c0_4 = arith.constant 0 : index
    %7 = vector.load %arg3[%c0_3, %c0_4] : memref<16x128xf32, #tpu.memory_space<vmem>>, vector<16x128xf32>
    tpu.vector_store %arg3[%c0_3, %c0_4], %6 {strides = array<i32>} : memref<16x128xf32, #tpu.memory_space<vmem>>, vector<16x128xf32>,
    return
  }
  func.func @transform_0(%arg0: i32) -> (i32, i32) {
    %c0_i32 = arith.constant 0 : i32
    %c0_i32_0 = arith.constant 0 : i32
    return %arg0, %c0_i32 : i32, i32
  }
  func.func @transform_1(%arg0: i32) -> (i32, i32) {
    %c0_i32 = arith.constant 0 : i32
    %c0_i32_0 = arith.constant 0 : i32
    return %arg0, %c0_i32 : i32, i32
  }
  func.func @transform_2(%arg0: i32) -> (i32, i32) {
    %c0_i32 = arith.constant 0 : i32
    %c0_i32_0 = arith.constant 0 : i32
    return %arg0, %c0_i32 : i32, i32
  }
}

</mosaic_0001>

<llo_original>
// kernel: tpu_custom_call.1
$region0: #{tpu_custom_call.1}
  #allocation0 [shape = 'u32[]', space=smem, size = 0x4, offset = 0x4, fixed_abs, tag = 'smem constant byte address 0x4 - core index']
  #allocation1 [shape = 'u32[72,128]{1,0:T(1,128)}', space=vmem, size = 0x9000, scoped, tag = 'internal scratch']
  %s0 = inlined_call_operand.hbm [shape: f32[16,128], index: 0, kind: input, shape index: {}]
  %s1 = inlined_call_operand.hbm [shape: s32[16,128], index: 1, kind: input, shape index: {}]
  %s2 = inlined_call_operand.hbm [shape: f32[16,128], index: 2, kind: output, shape index: {}]
  %s3 = sld [smem:[#allocation0]]
  $region26: #{tpu_custom_call.1} parent=0
    _
  %s5 = ssub.s32 1, %s3
  %s6 = scalar_select 0, %s5, %s3
  $region1: #{tpu_custom_call.1} parent=0
    #allocation2 [shape = 'u8[8192]{0}', space=vmem, size = 0x2000, scoped, tag = 'input window, operand 0, single buffered']
    #allocation3 [shape = 's32[1]{0}', space=sflag, size = 0x4, scoped, tag = 'scoped memory for tpu_custom_call.1']
    #allocation4 [shape = 's32[1]{0}', space=sflag, size = 0x4, scoped, tag = 'scoped memory for tpu_custom_call.1']
    #allocation5 [shape = 'u8[8192]{0}', space=vmem, size = 0x2000, scoped, tag = 'input window, operand 1, single buffered']
    #allocation6 [shape = 's32[1]{0}', space=sflag, size = 0x4, scoped, tag = 'scoped memory for tpu_custom_call.1']
    #allocation7 [shape = 'u8[8192]{0}', space=vmem, size = 0x2000, scoped, tag = 'output window, operand 0, single buffered']
    %7 = vsyncpa [#allocation3], 0
    %8 = vsyncpa [#allocation6], 0
    %9 = vsyncpa [#allocation4], 0
    // Predicated region
    $region2: #{tpu_custom_call.1} parent=1 // pred_check
      _
    $region3: #{tpu_custom_call.1} parent=1 // pred_check_branch
      %11 = sbr.rel (0) target = $region5
    $region4: #{tpu_custom_call.1} parent=1 // pred_region
      %13 = vsyncadd [#allocation3], 0
      %s14 = sshll.u32 %s0, 4
      %s15 = int_to_ptr.hbm [resolvable:$true] %s14
      %s16 = sshll.u32 [#allocation2], 4
      %s17 = int_to_ptr.vmem [resolvable:$true] %s16
      %22 = dma.hbm_to_vmem [thread:$0]  %s15, 256, %s17, [#allocation3], 128, 128, 8
    $region5: #{tpu_custom_call.1} parent=1 // pred_fallthru
      _
    // Predicated region
    $region6: #{tpu_custom_call.1} parent=1 // pred_check
      _
    $region7: #{tpu_custom_call.1} parent=1 // pred_check_branch
      %24 = sbr.rel (0) target = $region9
    $region8: #{tpu_custom_call.1} parent=1 // pred_region
      %26 = vsyncadd [#allocation6], 0
      %s27 = sshll.u32 %s1, 4
      %s28 = int_to_ptr.hbm [resolvable:$true] %s27
      %s29 = sshll.u32 [#allocation5], 4
      %s30 = int_to_ptr.vmem [resolvable:$true] %s29
      %35 = dma.hbm_to_vmem [thread:$0]  %s28, 256, %s30, [#allocation6], 128, 128, 8
    $region9: #{tpu_custom_call.1} parent=1 // pred_fallthru
      _
    // Predicated region
    $region10: #{tpu_custom_call.1} parent=1 // pred_check
      _
    $region11: #{tpu_custom_call.1} parent=1 // pred_check_branch
      %37 = sbr.rel (0) target = $region13
    $region12: #{tpu_custom_call.1} parent=1 // pred_region
      %39 = dma.done [#allocation3], 256
    $region13: #{tpu_custom_call.1} parent=1 // pred_fallthru
      _
    // Predicated region
    $region14: #{tpu_custom_call.1} parent=1 // pred_check
      _
    $region15: #{tpu_custom_call.1} parent=1 // pred_check_branch
      %41 = sbr.rel (0) target = $region17
    $region16: #{tpu_custom_call.1} parent=1 // pred_region
      %43 = dma.done [#allocation6], 256
    $region17: #{tpu_custom_call.1} parent=1 // pred_fallthru
      _
    %v44 = vld [vmem:[#allocation5] sm:$0xff]
    %v45 = vld [vmem:[#allocation5 + $0x8] sm:$0xff]
    %vm46 = vcmp.lt.s32.totalorder %v44, 0
    %vm47 = vcmp.lt.s32.totalorder %v45, 0
    %v48 = vsel %vm46, 1, 0
    %v49 = vsel %vm47, 1, 0
    %v50 = vcvt.s32.f32 %v48
    %v51 = vcvt.s32.f32 %v49
    %v52 = vld [vmem:[#allocation2] sm:$0xff]
    %v53 = vld [vmem:[#allocation2 + $0x8] sm:$0xff]
    %v54 = vmul.f32 %v52, %v50
    %v55 = vmul.f32 %v53, %v51
    %56 = vst [vmem:[#allocation7] sm:$0xff] %v54
    %57 = vst [vmem:[#allocation7 + $0x8] sm:$0xff] %v55
    // Predicated region
    $region18: #{tpu_custom_call.1} parent=1 // pred_check
      _
    $region19: #{tpu_custom_call.1} parent=1 // pred_check_branch
      %59 = sbr.rel (0) target = $region21
    $region20: #{tpu_custom_call.1} parent=1 // pred_region
      %61 = vsyncadd [#allocation4], 0
      %s62 = sshll.u32 [#allocation7], 4
      %s63 = int_to_ptr.vmem [resolvable:$true] %s62
      %s64 = sshll.u32 %s2, 4
      %s65 = int_to_ptr.hbm [resolvable:$true] %s64
      %70 = dma.vmem_to_hbm [thread:$0]  %s63, 256, %s65, [#allocation4], 128, 128, 8
    $region21: #{tpu_custom_call.1} parent=1 // pred_fallthru
      _
    // Predicated region
    $region22: #{tpu_custom_call.1} parent=1 // pred_check
      _
    $region23: #{tpu_custom_call.1} parent=1 // pred_check_branch
      %72 = sbr.rel (0) target = $region25
    $region24: #{tpu_custom_call.1} parent=1 // pred_region
      %74 = dma.done [#allocation4], 256
    $region25: #{tpu_custom_call.1} parent=1 // pred_fallthru
      _
    %75 = vsyncpa [#allocation3], 1
    %76 = vsyncpa [#allocation6], 1
    %77 = vsyncpa [#allocation4], 1

</llo_original>
